<compile_context>
chip_gen: v7x
topology: tpu7x:2x2x1
jax: 0.10.0
libtpu: 0.0.40
codegen_flags: <defaults>
</compile_context>

<pallas_src>
import functools

import jax
import jax.numpy as jnp
import numpy as np
from jax import lax
from jax.experimental import pallas as pl
from jax.experimental.pallas import tpu as pltpu


def _tpu_chip_info():
    """Best-effort (physical_vmem_bytes, tensorcores_per_chip, is_v7x)."""
    vmem = None
    try:
        vmem = getattr(pltpu.get_tpu_info(), "vmem_capacity_bytes", None)
    except Exception:
        vmem = None
    kind = ""
    try:
        kind = jax.devices()[0].device_kind.lower()
    except Exception:
        kind = ""
    is_v7x = ("v7" in kind) or ("7x" in kind)
    if vmem is None:
        if is_v7x:
            vmem = 64 * 2**20
        elif ("v5" in kind) or ("v6" in kind):
            vmem = 128 * 2**20
        else:
            vmem = 64 * 2**20          # unknown chip: be conservative
    tensorcores = 2 if is_v7x else 1   # v5e/v6e have a single TensorCore
    return int(vmem), tensorcores, bool(is_v7x)


def _make_kernel(batch, tile_b, n_classes, use_mxu_reductions, targets_sum_to_one):
    def kernel(x_ref, t_ref, m_ref, out_ref):
        g = pl.program_id(0)          # core-group ("parallel") axis
        s = pl.program_id(1)          # batch-tile ("arbitrary") axis
        steps = pl.num_programs(1)

        # Zero this group's accumulator tile on its first step.
        @pl.when(s == 0)
        def _():
            out_ref[...] = jnp.zeros_like(out_ref)

        x = x_ref[...].astype(jnp.float32)       # (TB, C)
        t = t_ref[...].astype(jnp.float32)       # (TB, C)
        m = m_ref[...]                           # (TB, 1) float32 in {0, 1}

        # Numerically stable soft cross entropy without materializing
        # log_softmax:  row_loss = sum(t) * lse - sum(t * (x - max)).
        x_max = jnp.max(x, axis=-1, keepdims=True)   # XLU reduce
        shifted = x - x_max
        p = jnp.exp(shifted)                         # EUP
        ts = t * shifted

        if use_mxu_reductions:
            # v7x path: HBM is fast enough that the VPU's inter-vreg
            # reduce-adds become the binding slot; push the C-axis reductions
            # onto the otherwise idle MXU (vector-extended slot, no VALU
            # contention).  precision=HIGHEST keeps ~f32 accuracy for the f32
            # operands (default precision would truncate the data to bf16).
            ones_cols = jnp.ones((n_classes, 128), dtype=jnp.float32)

            def rowsum(a):
                r = jnp.dot(a, ones_cols,
                            precision=lax.Precision.HIGHEST,
                            preferred_element_type=jnp.float32)
                return r[:, :1]                       # every lane equals the row sum

            sum_exp = rowsum(p)
            sum_ts = rowsum(ts)
            sum_t = None if targets_sum_to_one else rowsum(t)
        else:
            sum_exp = jnp.sum(p, axis=-1, keepdims=True)
            sum_ts = jnp.sum(ts, axis=-1, keepdims=True)
            sum_t = None if targets_sum_to_one else jnp.sum(t, axis=-1, keepdims=True)

        lse = jnp.log(sum_exp)
        if targets_sum_to_one:
            row_loss = lse - sum_ts                  # sum(t) == 1
        else:
            row_loss = sum_t * lse - sum_ts          # (TB, 1)

        # Row validity: global row index < B (kills partial-tile overhang and
        # phantom tiles of the core split), combined with mask == 1.  The
        # select keeps garbage/NaN overhang rows from poisoning the sum.
        tile_idx = g * steps + s
        rows = tile_idx * tile_b + lax.broadcasted_iota(jnp.int32, (tile_b, 1), 0)
        keep = (rows < batch) & (m > 0.5)
        partial = jnp.sum(jnp.where(keep, row_loss, 0.0))

        # Broadcast-accumulate the scalar into this group's (8, 128) tile.
        # (Serial f32 accumulation; fine for typical B, noted for huge B*C.)
        out_ref[...] += partial

    return kernel


@functools.partial(jax.jit, static_argnames=("targets_sum_to_one",))
def mask_soft_target_cross_entropy(x, target, mask, targets_sum_to_one=False):
    """x: (B, C), target: (B, C), mask: (B,) with 0/1. Returns scalar loss."""
    B, C = x.shape
    mask_f = (mask == 1).astype(jnp.float32).reshape(B, 1)

    x_item = jnp.dtype(x.dtype).itemsize
    t_item = jnp.dtype(target.dtype).itemsize
    bytes_per_row_in = C * (x_item + t_item)

    phys_vmem, tensorcores, is_v7x = _tpu_chip_info()
    vmem_cap = (phys_vmem * 3) // 4        # ~96 MiB on v5e/v6e, ~48 MiB on v7x

    # --- tile sizing: ~6 MiB of input bytes (x + target) per grid step,
    # sized by the input dtype (bf16 inputs get 2x the rows of f32), capped at
    # 4096 rows and at the (8-rounded) batch; minimum 8 rows (one sublane tile).
    rows_cap = max(8, (B // 8) * 8)
    tile_b = (6 * 2**20) // max(1, bytes_per_row_in)
    tile_b = min(tile_b, 4096, rows_cap)
    tile_b = max(8, (tile_b // 8) * 8)

    def vmem_budget(tb):
        in_bytes = 2 * tb * bytes_per_row_in           # x, t double-buffered
        f32_tmp = 5 * tb * C * 4                       # in-kernel f32 tile temps
        row_tmp = 8 * tb * 128 * 4                     # lane-padded per-row values
        misc = 2 * (tb * 4 + 8 * 128 * 4) + C * 128 * 4
        return int(1.25 * (in_bytes + f32_tmp + row_tmp + misc))

    while tile_b > 8 and vmem_budget(tile_b) > vmem_cap:
        tile_b = max(8, ((tile_b // 2) // 8) * 8)
    vmem_limit = int(min(vmem_cap, max(32 * 2**20, vmem_budget(tile_b))))

    num_tiles = -(-B // tile_b)
    groups = 2 if (tensorcores >= 2 and num_tiles >= 2) else 1
    steps = -(-num_tiles // groups)

    def in_map(g, s):
        # Phantom tiles (when groups * steps > num_tiles) are clamped onto the
        # last real block; their rows are discarded in-kernel via the
        # row-validity predicate, so nothing is double counted.
        return (jnp.minimum(g * steps + s, num_tiles - 1), 0)

    # MXU-offloaded reductions only help where the VPU binds (v7x) and C is
    # wide enough for the MXU to be worthwhile.
    use_mxu_reductions = bool(is_v7x and C >= 256)

    cost = pl.CostEstimate(
        flops=8 * B * C,
        transcendentals=B * C,
        bytes_accessed=B * C * (x_item + t_item) + B * 4 + groups * 8 * 128 * 4,
    )

    out = pl.pallas_call(
        _make_kernel(B, tile_b, C, use_mxu_reductions, targets_sum_to_one),
        out_shape=jax.ShapeDtypeStruct((groups * 8, 128), jnp.float32),
        grid_spec=pltpu.PrefetchScalarGridSpec(
            num_scalar_prefetch=0,
            grid=(groups, steps),
            # (pipeline_mode=pl.Buffered(3) on x/t is worth a sweep on v5e if
            #  profiles show exposed DMA; keep 2 buffers + bigger tiles on v7x.)
            in_specs=[
                pl.BlockSpec((tile_b, C), in_map),
                pl.BlockSpec((tile_b, C), in_map),
                pl.BlockSpec((tile_b, 1), in_map),
            ],
            out_specs=pl.BlockSpec((8, 128), lambda g, s: (g, 0)),
        ),
        compiler_params=pltpu.CompilerParams(
            dimension_semantics=("parallel", "arbitrary"),
            vmem_limit_bytes=vmem_limit,
        ),
        cost_estimate=cost,
    )(x, target, mask_f)

    # Each group's (8, 128) tile is filled with that group's partial sum.
    partials = out.reshape(groups, 8, 128)[:, 0, 0]
    loss_sum = jnp.sum(partials)
    cnt = jnp.sum(mask_f)
    # NaN when no rows are selected, matching torch.mean over an empty tensor.
    return (loss_sum / cnt).astype(jnp.float32)


def _reference(x, target, mask):
    x = x.astype(jnp.float32)
    target = target.astype(jnp.float32)
    log_sm = jax.nn.log_softmax(x, axis=-1)
    row_loss = jnp.sum(-target * log_sm, axis=-1)
    m = (mask == 1).astype(jnp.float32)
    return jnp.sum(row_loss * m) / jnp.sum(m)


if __name__ == "__main__":
    key = jax.random.PRNGKey(0)
    kx, kt, km = jax.random.split(key, 3)

    B, C = 16, 32
    x = jax.random.normal(kx, (B, C), dtype=jnp.float32)
    # Soft targets: rows on the probability simplex.
    target = jax.nn.softmax(jax.random.normal(kt, (B, C), dtype=jnp.float32),
                            axis=-1)
    # Deterministic 0/1 mask with at least one selected row.
    mask = (jax.random.uniform(km, (B,)) > 0.4).astype(jnp.int32)
    mask = mask.at[0].set(1)

    out = mask_soft_target_cross_entropy(x, target, mask)
    out = jax.block_until_ready(out)
    ref = _reference(x, target, mask)
    np.testing.assert_allclose(np.asarray(out), np.asarray(ref),
                               rtol=1e-5, atol=1e-5)

    # Partial-edge-block + multi-step-accumulator path: B not divisible by 8.
    B2 = 13
    x2 = jax.random.normal(jax.random.PRNGKey(1), (B2, C), dtype=jnp.float32)
    t2 = jax.nn.softmax(
        jax.random.normal(jax.random.PRNGKey(2), (B2, C), dtype=jnp.float32),
        axis=-1)
    m2 = jnp.array([1, 0, 1, 1, 0, 1, 0, 0, 1, 1, 0, 1, 1], dtype=jnp.int32)
    out2 = jax.block_until_ready(mask_soft_target_cross_entropy(x2, t2, m2))
    ref2 = _reference(x2, t2, m2)
    np.testing.assert_allclose(np.asarray(out2), np.asarray(ref2),
                               rtol=1e-5, atol=1e-5)

    print("KERNEL_OK")
</pallas_src>

<mosaic_0001>
module attributes {stable_mosaic.version = 11 : i64} {
  func.func @kernel(%arg0: i32, %arg1: i32, %arg2: memref<16x32xf32, #tpu.memory_space<vmem>>, %arg3: memref<16x32xf32, #tpu.memory_space<vmem>>, %arg4: memref<16x1xf32, #tpu.memory_space<vmem>>, %arg5: memref<8x128xf32, #tpu.memory_space<vmem>>) attributes {dimension_semantics = [#tpu.dimension_semantics<parallel>, #tpu.dimension_semantics<arbitrary>], iteration_bounds = array<i64: 1, 1>, scalar_prefetch = 0 : i64, scratch_operands = 0 : i64, tpu.core_type = #tpu.core_type<tc>, window_params = [{transform_indices = @transform_0, window_bounds = array<i64: 16, 32>}, {transform_indices = @transform_1, window_bounds = array<i64: 16, 32>}, {transform_indices = @transform_2, window_bounds = array<i64: 16, 1>}, {transform_indices = @transform_3, window_bounds = array<i64: 8, 128>}]} {
    %c0_i32 = arith.constant 0 : i32
    %0 = arith.cmpi eq, %arg1, %c0_i32 : i32
    %1 = arith.extui %0 : i1 to i32
    %c0_i32_0 = arith.constant 0 : i32
    %2 = arith.cmpi ne, %1, %c0_i32_0 : i32
    scf.if %2 {
      %cst_17 = arith.constant 0.000000e+00 : f32
      %42 = vector.broadcast %cst_17 : f32 to vector<8x128xf32>
      %c0_18 = arith.constant 0 : index
      %c0_19 = arith.constant 0 : index
      %43 = vector.load %arg5[%c0_18, %c0_19] : memref<8x128xf32, #tpu.memory_space<vmem>>, vector<8x128xf32>
      tpu.vector_store %arg5[%c0_18, %c0_19], %42 {strides = array<i32>} : memref<8x128xf32, #tpu.memory_space<vmem>>, vector<8x128xf32>,
    } else {
    }
    %c0 = arith.constant 0 : index
    %c0_1 = arith.constant 0 : index
    %3 = vector.load %arg2[%c0, %c0_1] : memref<16x32xf32, #tpu.memory_space<vmem>>, vector<16x32xf32>
    %c0_2 = arith.constant 0 : index
    %c0_3 = arith.constant 0 : index
    %4 = vector.load %arg3[%c0_2, %c0_3] : memref<16x32xf32, #tpu.memory_space<vmem>>, vector<16x32xf32>
    %c0_4 = arith.constant 0 : index
    %c0_5 = arith.constant 0 : index
    %5 = vector.load %arg4[%c0_4, %c0_5] : memref<16x1xf32, #tpu.memory_space<vmem>>, vector<16x1xf32>
    %cst = arith.constant dense<0xFF800000> : vector<16xf32>
    %6 = vector.multi_reduction <maximumf>, %3, %cst [1] : vector<16x32xf32> to vector<16xf32>
    %7 = vector.shape_cast %6 : vector<16xf32> to vector<16x1xf32>
    %8 = vector.broadcast %7 : vector<16x1xf32> to vector<16x32xf32>
    %9 = arith.subf %3, %8 : vector<16x32xf32>
    %10 = math.exp %9 : vector<16x32xf32>
    %11 = arith.mulf %4, %9 : vector<16x32xf32>
    %cst_6 = arith.constant dense<0.000000e+00> : vector<16xf32>
    %12 = vector.multi_reduction <add>, %10, %cst_6 [1] : vector<16x32xf32> to vector<16xf32>
    %13 = vector.shape_cast %12 : vector<16xf32> to vector<16x1xf32>
    %cst_7 = arith.constant dense<0.000000e+00> : vector<16xf32>
    %14 = vector.multi_reduction <add>, %11, %cst_7 [1] : vector<16x32xf32> to vector<16xf32>
    %15 = vector.shape_cast %14 : vector<16xf32> to vector<16x1xf32>
    %cst_8 = arith.constant dense<0.000000e+00> : vector<16xf32>
    %16 = vector.multi_reduction <add>, %4, %cst_8 [1] : vector<16x32xf32> to vector<16xf32>
    %17 = vector.shape_cast %16 : vector<16xf32> to vector<16x1xf32>
    %18 = math.log %13 : vector<16x1xf32>
    %19 = arith.mulf %17, %18 : vector<16x1xf32>
    %20 = arith.subf %19, %15 : vector<16x1xf32>
    %c1_i32 = arith.constant 1 : i32
    %21 = arith.muli %arg0, %c1_i32 : i32
    %22 = arith.addi %21, %arg1 : i32
    %c16_i32 = arith.constant 16 : i32
    %23 = arith.muli %22, %c16_i32 : i32
    %24 = tpu.iota {dimensions = array<i32: 0>} : vector<16x1xi32>
    %25 = vector.broadcast %23 : i32 to vector<16x1xi32>
    %26 = arith.addi %25, %24 : vector<16x1xi32>
    %c16_i32_9 = arith.constant 16 : i32
    %27 = vector.broadcast %c16_i32_9 : i32 to vector<16x1xi32>
    %28 = arith.cmpi slt, %26, %27 : vector<16x1xi32>
    %cst_10 = arith.constant 5.000000e-01 : f32
    %29 = vector.broadcast %cst_10 : f32 to vector<16x1xf32>
    %30 = arith.cmpf ogt, %5, %29 : vector<16x1xf32>
    %31 = arith.andi %28, %30 : vector<16x1xi1>
    %cst_11 = arith.constant 0.000000e+00 : f32
    %32 = vector.broadcast %cst_11 : f32 to vector<16x1xf32>
    %33 = arith.select %31, %20, %32 : vector<16x1xi1>, vector<16x1xf32>
    %34 = vector.shape_cast %33 : vector<16x1xf32> to vector<1x16x1xf32>
    %cst_12 = arith.constant dense<0.000000e+00> : vector<1xf32>
    %35 = vector.multi_reduction <add>, %34, %cst_12 [1, 2] : vector<1x16x1xf32> to vector<1xf32>
    %36 = vector.shape_cast %35 : vector<1xf32> to vector<1x1x1xf32>
    %37 = vector.extract %36[0, 0, 0] : f32 from vector<1x1x1xf32>
    %c0_13 = arith.constant 0 : index
    %c0_14 = arith.constant 0 : index
    %38 = vector.load %arg5[%c0_13, %c0_14] : memref<8x128xf32, #tpu.memory_space<vmem>>, vector<8x128xf32>
    %39 = vector.broadcast %37 : f32 to vector<8x128xf32>
    %40 = arith.addf %38, %39 : vector<8x128xf32>
    %c0_15 = arith.constant 0 : index
    %c0_16 = arith.constant 0 : index
    %41 = vector.load %arg5[%c0_15, %c0_16] : memref<8x128xf32, #tpu.memory_space<vmem>>, vector<8x128xf32>
    tpu.vector_store %arg5[%c0_15, %c0_16], %40 {strides = array<i32>} : memref<8x128xf32, #tpu.memory_space<vmem>>, vector<8x128xf32>,
    return
  }
  func.func @transform_0(%arg0: i32, %arg1: i32) -> (i32, i32) {
    %c1_i32 = arith.constant 1 : i32
    %0 = arith.muli %arg0, %c1_i32 : i32
    %1 = arith.addi %0, %arg1 : i32
    %c0_i32 = arith.constant 0 : i32
    %2 = arith.minsi %1, %c0_i32 : i32
    %c0_i32_0 = arith.constant 0 : i32
    %c0_i32_1 = arith.constant 0 : i32
    return %2, %c0_i32_0 : i32, i32
  }
  func.func @transform_1(%arg0: i32, %arg1: i32) -> (i32, i32) {
    %c1_i32 = arith.constant 1 : i32
    %0 = arith.muli %arg0, %c1_i32 : i32
    %1 = arith.addi %0, %arg1 : i32
    %c0_i32 = arith.constant 0 : i32
    %2 = arith.minsi %1, %c0_i32 : i32
    %c0_i32_0 = arith.constant 0 : i32
    %c0_i32_1 = arith.constant 0 : i32
    return %2, %c0_i32_0 : i32, i32
  }
  func.func @transform_2(%arg0: i32, %arg1: i32) -> (i32, i32) {
    %c1_i32 = arith.constant 1 : i32
    %0 = arith.muli %arg0, %c1_i32 : i32
    %1 = arith.addi %0, %arg1 : i32
    %c0_i32 = arith.constant 0 : i32
    %2 = arith.minsi %1, %c0_i32 : i32
    %c0_i32_0 = arith.constant 0 : i32
    %c0_i32_1 = arith.constant 0 : i32
    return %2, %c0_i32_0 : i32, i32
  }
  func.func @transform_3(%arg0: i32, %arg1: i32) -> (i32, i32) {
    %c0_i32 = arith.constant 0 : i32
    %c0_i32_0 = arith.constant 0 : i32
    return %arg0, %c0_i32 : i32, i32
  }
}

</mosaic_0001>

<llo_original>
// kernel: mask_soft_target_cross_entropy.1
$region0: #{mask_soft_target_cross_entropy.1}
  #allocation0 [shape = 'u32[]', space=smem, size = 0x4, offset = 0x4, fixed_abs, tag = 'smem constant byte address 0x4 - core index']
  #allocation1 [shape = 'u32[144,128]{1,0:T(1,128)}', space=vmem, size = 0x12000, scoped, tag = 'internal scratch']
  %s0 = inlined_call_operand.vmem [shape: f32[16,32], index: 0, kind: input, shape index: {}]
  %s1 = inlined_call_operand.hbm [shape: f32[16,32], index: 1, kind: input, shape index: {}]
  %s2 = inlined_call_operand.vmem [shape: f32[16,1], index: 2, kind: input, shape index: {}]
  %s3 = inlined_call_operand.vmem [shape: f32[8,128], index: 3, kind: output, shape index: {}]
  %s4 = sld [smem:[#allocation0]]
  $region30: #{mask_soft_target_cross_entropy.1} parent=0
    _
  %s6 = ssub.s32 1, %s4
  %s7 = scalar_select 0, %s6, %s4
  $region1: #{mask_soft_target_cross_entropy.1} parent=0
    #allocation2 [shape = 'u8[8192]{0}', space=vmem, size = 0x2000, scoped, tag = 'input window, operand 1, single buffered']
    #allocation3 [shape = 's32[1]{0}', space=sflag, size = 0x4, scoped, tag = 'scoped memory for mask_soft_target_cross_entropy.1']
    %8 = vsyncpa [#allocation3], 0
    // Predicated region
    $region2: #{mask_soft_target_cross_entropy.1} parent=1 // pred_check
      _
    $region3: #{mask_soft_target_cross_entropy.1} parent=1 // pred_check_branch
      %10 = sbr.rel (0) target = $region5
    $region4: #{mask_soft_target_cross_entropy.1} parent=1 // pred_region
      %s11 = sadd.s32 0, 0
      %p12 = scmp.lt.s32.totalorder %s11, 0
      %s13 = scalar_select %p12, %s11, 0
      %s14 = smul.u32 2, %s13
      %p15 = scmp.lt.s32.totalorder %s14, 1
      %s16 = scalar_select %p15, %s14, 1
      %s17 = smul.addr %s16, 8
      %s18 = scalar_lea.vmem %s0, %s17
      %s19 = sadd.s32 0, 0
      %p20 = scmp.lt.s32.totalorder %s19, 0
      %s21 = scalar_select %p20, %s19, 0
      %s22 = smul.u32 2, %s21
    $region5: #{mask_soft_target_cross_entropy.1} parent=1 // pred_fallthru
      _
    // Predicated region
    $region6: #{mask_soft_target_cross_entropy.1} parent=1 // pred_check
      _
    $region7: #{mask_soft_target_cross_entropy.1} parent=1 // pred_check_branch
      %24 = sbr.rel (0) target = $region9
    $region8: #{mask_soft_target_cross_entropy.1} parent=1 // pred_region
      %s25 = sadd.s32 0, 0
      %p26 = scmp.lt.s32.totalorder %s25, 0
      %s27 = scalar_select %p26, %s25, 0
      %s28 = smul.u32 2, %s27
      %s30 = ssub.s32 256, 256
      %31 = vsyncadd [#allocation3], %s30
      %s32 = smul.addr %s28, 128
      %s33 = scalar_lea.hbm %s1, %s32
      %s34 = sshll.u32 [#allocation2], 4
      %s35 = int_to_ptr.vmem [resolvable:$true] %s34
      %40 = dma.hbm_to_vmem [thread:$0]  %s33, 256, %s35, [#allocation3], 128, 128, 8
    $region9: #{mask_soft_target_cross_entropy.1} parent=1 // pred_fallthru
      _
    // Predicated region
    $region10: #{mask_soft_target_cross_entropy.1} parent=1 // pred_check
      _
    $region11: #{mask_soft_target_cross_entropy.1} parent=1 // pred_check_branch
      %42 = sbr.rel (0) target = $region13
    $region12: #{mask_soft_target_cross_entropy.1} parent=1 // pred_region
      %s43 = sadd.s32 0, 0
      %p44 = scmp.lt.s32.totalorder %s43, 0
      %s45 = scalar_select %p44, %s43, 0
      %s46 = smul.u32 2, %s45
      %p47 = scmp.lt.s32.totalorder %s46, 1
      %s48 = scalar_select %p47, %s46, 1
      %s49 = smul.addr %s48, 8
      %s50 = scalar_lea.vmem %s2, %s49
      %s51 = sadd.s32 0, 0
      %p52 = scmp.lt.s32.totalorder %s51, 0
      %s53 = scalar_select %p52, %s51, 0
      %s54 = smul.u32 2, %s53
    $region13: #{mask_soft_target_cross_entropy.1} parent=1 // pred_fallthru
      _
    // Predicated region
    $region14: #{mask_soft_target_cross_entropy.1} parent=1 // pred_check
      _
    $region15: #{mask_soft_target_cross_entropy.1} parent=1 // pred_check_branch
      %56 = sbr.rel (0) target = $region17
    $region16: #{mask_soft_target_cross_entropy.1} parent=1 // pred_region
      %57 = dma.done [#allocation3], 256
    $region17: #{mask_soft_target_cross_entropy.1} parent=1 // pred_fallthru
      _
    %s58 = sadd.s32 0, 0
    %p59 = scmp.lt.s32.totalorder %s58, 0
    %s60 = scalar_select %p59, %s58, 0
    %s61 = smul.u32 2, %s60
    %p62 = scmp.lt.s32.totalorder %s61, 1
    %s63 = scalar_select %p62, %s61, 1
    %s64 = smul.addr %s63, 8
    %s65 = scalar_lea.vmem %s0, %s64
    %s66 = sadd.s32 0, 0
    %p67 = scmp.lt.s32.totalorder %s66, 0
    %s68 = scalar_select %p67, %s66, 0
    %s69 = smul.u32 2, %s68
    %p70 = scmp.lt.s32.totalorder %s69, 1
    %s71 = scalar_select %p70, %s69, 1
    %s72 = smul.addr %s71, 8
    %s73 = scalar_lea.vmem %s2, %s72
    %s74 = sadd.s32 0, 0
    %p75 = scmp.lt.s32.totalorder %s74, 0
    %s76 = scalar_select %p75, %s74, 0
    %s77 = smul.u32 2, %s76
    %p78 = scmp.lt.s32.totalorder %s77, 1
    %s79 = scalar_select %p78, %s77, 1
    %s80 = smul.addr %s79, 8
    %s81 = scalar_lea.vmem %s0, %s80
    %s82 = sadd.s32 0, 0
    %p83 = scmp.lt.s32.totalorder %s82, 0
    %s84 = scalar_select %p83, %s82, 0
    %s85 = smul.u32 2, %s84
    %s86 = sadd.s32 0, 0
    %p87 = scmp.lt.s32.totalorder %s86, 0
    %s88 = scalar_select %p87, %s86, 0
    %s89 = smul.u32 2, %s88
    %s90 = sadd.s32 0, 0
    %p91 = scmp.lt.s32.totalorder %s90, 0
    %s92 = scalar_select %p91, %s90, 0
    %s93 = smul.u32 2, %s92
    %p94 = scmp.lt.s32.totalorder %s93, 1
    %s95 = scalar_select %p94, %s93, 1
    %s96 = smul.addr %s95, 8
    %s97 = scalar_lea.vmem %s2, %s96
    %s98 = sadd.s32 0, 0
    %p99 = scmp.lt.s32.totalorder %s98, 0
    %s100 = scalar_select %p99, %s98, 0
    %s101 = smul.u32 2, %s100
    %p102 = scmp.eq.s32.totalorder 0, 0
    // Predicated region
    $region18: #{mask_soft_target_cross_entropy.1} parent=1 // pred_check
      %p103 = pneg %p102
    $region19: #{mask_soft_target_cross_entropy.1} parent=1 // pred_check_branch
      %105 = sbr.rel (%p103) target = $region21
    $region20: #{mask_soft_target_cross_entropy.1} parent=1 // pred_region
      %106 = vst [vmem:[%s3] sm:$0xff] 0.0
    $region21: #{mask_soft_target_cross_entropy.1} parent=1 // pred_fallthru
      _
    %v107 = vld [vmem:[%s81] sm:$0xff]
    %v108 = vld [vmem:[%s81 + $0x8] sm:$0xff]
    %v109 = vld [vmem:[#allocation2] sm:$0xff]
    %v110 = vld [vmem:[#allocation2 + $0x8] sm:$0xff]
    %v111 = vld [vmem:[%s97] sm:$0xff]
    %v112 = vld [vmem:[%s97 + $0x8] sm:$0xff]
    %vm113 = vcmask 261120
    %v114 = vsel %vm113, %v107, -inf
    %115 = vmax.xlane.f32.xlu0 %v114
    %v116 = vpop.xlane.xlu0 %115
    %v117 = vsel %vm113, %v108, -inf
    %118 = vmax.xlane.f32.xlu0 %v117
    %v119 = vpop.xlane.xlu0 %118
    %v120 = vsub.f32 %v107, %v116
    %v121 = vsub.f32 %v108, %v119
    %v122 = vmul.f32 %v120, 1.442695
    %v123 = vpow.pop %v122
    %v124 = vmul.f32 %v121, 1.442695
    %v125 = vpow.pop %v124
    %v126 = vmul.f32 %v109, %v120
    %v127 = vmul.f32 %v110, %v121
    %v128 = vsel %vm113, %v123, 0.0
    %129 = vadd.xlane.f32.xlu0 %v128
    %v130 = vpop.xlane.xlu0 %129
    %v131 = vsel %vm113, %v125, 0.0
    %132 = vadd.xlane.f32.xlu0 %v131
    %v133 = vpop.xlane.xlu0 %132
    %v134 = vsel %vm113, %v126, 0.0
    %135 = vadd.xlane.f32.xlu0 %v134
    %v136 = vpop.xlane.xlu0 %135
    %v137 = vsel %vm113, %v127, 0.0
    %138 = vadd.xlane.f32.xlu0 %v137
    %v139 = vpop.xlane.xlu0 %138
    %v140 = vsel %vm113, %v109, 0.0
    %141 = vadd.xlane.f32.xlu0 %v140
    %v142 = vpop.xlane.xlu0 %141
    %v143 = vsel %vm113, %v110, 0.0
    %144 = vadd.xlane.f32.xlu0 %v143
    %v145 = vpop.xlane.xlu0 %144
    %v146 = vlog2.pop %v130
    %v147 = vmul.f32 %v146, 0.6931472
    %v148 = vlog2.pop %v133
    %v149 = vmul.f32 %v148, 0.6931472
    %v150 = vmul.f32 %v142, %v147
    %v151 = vmul.f32 %v145, %v149
    %v152 = vsub.f32 %v150, %v136
    %v153 = vsub.f32 %v151, %v139
    %s154 = sadd.s32 0, 0
    %s155 = smul.u32 %s154, 16
    %v156 = vlaneseq
    %v157 = vshrl.u32 %v156, 7
    %v158 = vadd.s32 %v157, 8
    %v159 = vstv %s155
    %v160 = vadd.s32 %v159, %v157
    %v161 = vadd.s32 %v159, %v158
    %vm162 = vcmp.lt.s32.totalorder %v160, 16
    %vm163 = vcmp.lt.s32.totalorder %v161, 16
    %vm164 = vcmp.gt.f32.partialorder %v111, 0.5
    %vm165 = vcmp.gt.f32.partialorder %v112, 0.5
    %vm166 = vmand %vm162, %vm164
    %vm167 = vmand %vm163, %vm165
    %v168 = vsel %vm166, %v152, 0.0
    %v169 = vsel %vm167, %v153, 0.0
    %vm170 = vcmask 7168
    %v171 = vsel %vm170, %v168, 0.0
    %v172 = vsel %vm170, %v169, 0.0
    %v173 = vadd.f32 %v171, %v172
    %174 = vadd.xlane.f32.xlu0 %v173
    %v175 = vpop.xlane.xlu0 %174
    %v176 = vrot.slane %v175, 4
    %v177 = vadd.f32 %v175, %v176
    %v178 = vrot.slane %v177, 2
    %v179 = vadd.f32 %v177, %v178
    %v180 = vrot.slane %v179, 1
    %v181 = vadd.f32 %v179, %v180
    %s182 = vtos %v181
    %v183 = vld [vmem:[%s3] sm:$0xff]
    %v184 = vstv %s182
    %v185 = vadd.f32 %v183, %v184
    %186 = vst [vmem:[%s3] sm:$0xff] %v185
    // Predicated region
    $region22: #{mask_soft_target_cross_entropy.1} parent=1 // pred_check
      _
    $region23: #{mask_soft_target_cross_entropy.1} parent=1 // pred_check_branch
      %188 = sbr.rel (0) target = $region25
    $region24: #{mask_soft_target_cross_entropy.1} parent=1 // pred_region
      _
    $region25: #{mask_soft_target_cross_entropy.1} parent=1 // pred_fallthru
      _
    // Predicated region
    $region26: #{mask_soft_target_cross_entropy.1} parent=1 // pred_check
      _
    $region27: #{mask_soft_target_cross_entropy.1} parent=1 // pred_check_branch
      %190 = sbr.rel (0) target = $region29
    $region28: #{mask_soft_target_cross_entropy.1} parent=1 // pred_region
      _
    $region29: #{mask_soft_target_cross_entropy.1} parent=1 // pred_fallthru
      _
    %191 = vsyncpa [#allocation3], 1

</llo_original>
